<compile_context>
chip_gen: v6e
topology: v6e:2x2x1
jax: 0.10.0
libtpu: 0.0.40
codegen_flags: <defaults>
</compile_context>

<pallas_src>
import jax
import jax.numpy as jnp
from jax.experimental import pallas as pl
from jax.experimental.pallas import tpu as pltpu

C = 16          # channels
N, H, W = 1, 1, 64


def _fused_kernel(x1_ref, x2_ref, x3_ref, x4_ref, x5_ref,
                  w_ref, b_ref, out_ref):
    # Activation refs: (C, W) = (16, 64).
    # w_ref: (3, C, C) packed conv weights (Cout, Cin).
    # b_ref: (3, C, W) packed, pre-broadcast biases (full-vreg adds, no lane splat).
    x1 = x1_ref[...]
    x2 = x2_ref[...]
    x3 = x3_ref[...]
    x4 = x4_ref[...]
    x5 = x5_ref[...]

    w1 = w_ref[0]
    w2 = w_ref[1]
    w3 = w_ref[2]
    b1 = b_ref[0]
    b2 = b_ref[1]
    b3 = b_ref[2]

    # Tail (x4 + x5 + b3) is independent of the matmul chain; computing it up front
    # lets the scheduler hide this VPU work under MXU latency.
    tail = x4 + x5 + b3

    v1 = jnp.dot(w1, x1, preferred_element_type=jnp.float32) + b1
    v2 = v1 + x2
    v3 = jnp.maximum(v2, 0.0)
    v4 = jnp.dot(w2, v3, preferred_element_type=jnp.float32) + b2
    v5 = x3 + v4
    v6 = jnp.maximum(v5, 0.0)
    v7 = v2 + v6
    v8 = jnp.dot(w3, v7, preferred_element_type=jnp.float32)
    out_ref[...] = jnp.maximum(v8 + tail, 0.0)


def pack_params(params):
    """Pack conv params once, outside the hot path (they are constants across calls).

    Returns:
      w_packed: (3, C, C) float32   -- conv weights, (Cout, Cin), no transpose needed.
      b_packed: (3, C, W) float32   -- biases pre-broadcast across the lane dim.
    """
    (w1, b1), (w2, b2), (w3, b3) = params
    w_packed = jnp.stack([w1.reshape(C, C), w2.reshape(C, C), w3.reshape(C, C)], axis=0)
    b_packed = jnp.stack(
        [jnp.broadcast_to(b.reshape(C, 1), (C, W)) for b in (b1, b2, b3)], axis=0)
    return w_packed.astype(jnp.float32), b_packed.astype(jnp.float32)


def model_forward(x1, x2, x3, x4, x5, w_packed, b_packed):
    n, c, h, w = x1.shape
    assert n == 1 and h == 1, "kernel layout assumes N=1, H=1 (free NCHW->(C,W) reshape)"
    # TODO(synk): lane dim is 64 (<128) so stores are half-lane masked; batching
    # multiple problems along the lane dim would fix this but there is only one here.

    # Free reshapes: (1, C, 1, W) is already contiguous (C, W).
    xs = [x.reshape(c, w) for x in (x1, x2, x3, x4, x5)]

    vmem = pl.BlockSpec(memory_space=pltpu.MemorySpace.VMEM)
    out_cw = pl.pallas_call(
        _fused_kernel,
        out_shape=jax.ShapeDtypeStruct((c, w), jnp.float32),
        in_specs=[vmem] * 7,
        out_specs=vmem,
    )(xs[0], xs[1], xs[2], xs[3], xs[4], w_packed, b_packed)

    # Free reshape back to NCHW.
    return out_cw.reshape(n, c, h, w)


def _reference(x1, x2, x3, x4, x5, params):
    # Pure-JAX reference of the PyTorch forward (1x1 convs as matmuls).
    (w1, b1), (w2, b2), (w3, b3) = params

    def conv1x1(x, wt, b):
        y = jnp.einsum('nchw,oc->nohw', x, wt.reshape(C, C))
        return y + b.reshape(1, C, 1, 1)

    v1 = conv1x1(x1, w1, b1)
    v2 = v1 + x2
    v3 = jnp.maximum(v2, 0.0)
    v4 = conv1x1(v3, w2, b2)
    v5 = x3 + v4
    v6 = jnp.maximum(v5, 0.0)
    v7 = v2 + v6
    v8 = conv1x1(v7, w3, b3)
    v9 = v8 + x4
    return jnp.maximum(v9 + x5, 0.0)


if __name__ == "__main__":
    key = jax.random.PRNGKey(0)
    keys = jax.random.split(key, 11)

    # Deterministic inputs, shapes match the PyTorch script: (1, 16, 1, 64)
    x1 = jax.random.normal(keys[0], (N, C, H, W), jnp.float32)
    x2 = jax.random.normal(keys[1], (N, C, H, W), jnp.float32)
    x3 = jax.random.normal(keys[2], (N, C, H, W), jnp.float32)
    x4 = jax.random.normal(keys[3], (N, C, H, W), jnp.float32)
    x5 = jax.random.normal(keys[4], (N, C, H, W), jnp.float32)

    # Deterministic conv params: weight (16, 16, 1, 1), bias (16,)
    scale = 0.1
    params = (
        (scale * jax.random.normal(keys[5], (C, C, 1, 1), jnp.float32),
         scale * jax.random.normal(keys[6], (C,), jnp.float32)),
        (scale * jax.random.normal(keys[7], (C, C, 1, 1), jnp.float32),
         scale * jax.random.normal(keys[8], (C,), jnp.float32)),
        (scale * jax.random.normal(keys[9], (C, C, 1, 1), jnp.float32),
         scale * jax.random.normal(keys[10], (C,), jnp.float32)),
    )

    # Pack parameters once (outside the hot path).
    w_packed, b_packed = pack_params(params)
    w_packed, b_packed = jax.block_until_ready((w_packed, b_packed))

    out = model_forward(x1, x2, x3, x4, x5, w_packed, b_packed)
    out = jax.block_until_ready(out)

    ref = _reference(x1, x2, x3, x4, x5, params)
    assert out.shape == (N, C, H, W)
    assert jnp.allclose(out, ref, atol=1e-5, rtol=1e-5), "mismatch vs reference"

    print("KERNEL_OK")
</pallas_src>

<mosaic_0001>
module attributes {stable_mosaic.version = 11 : i64} {
  func.func @_fused_kernel(%arg0: memref<16x64xf32, #tpu.memory_space<vmem>>, %arg1: memref<16x64xf32, #tpu.memory_space<vmem>>, %arg2: memref<16x64xf32, #tpu.memory_space<vmem>>, %arg3: memref<16x64xf32, #tpu.memory_space<vmem>>, %arg4: memref<16x64xf32, #tpu.memory_space<vmem>>, %arg5: memref<3x16x16xf32, #tpu.memory_space<vmem>>, %arg6: memref<3x16x64xf32, #tpu.memory_space<vmem>>, %arg7: memref<16x64xf32, #tpu.memory_space<vmem>>) attributes {dimension_semantics = [], scalar_prefetch = 0 : i64, scratch_operands = 0 : i64, tpu.core_type = #tpu.core_type<tc>} {
    %c0 = arith.constant 0 : index
    %c0_0 = arith.constant 0 : index
    %0 = vector.load %arg0[%c0, %c0_0] : memref<16x64xf32, #tpu.memory_space<vmem>>, vector<16x64xf32>
    %c0_1 = arith.constant 0 : index
    %c0_2 = arith.constant 0 : index
    %1 = vector.load %arg1[%c0_1, %c0_2] : memref<16x64xf32, #tpu.memory_space<vmem>>, vector<16x64xf32>
    %c0_3 = arith.constant 0 : index
    %c0_4 = arith.constant 0 : index
    %2 = vector.load %arg2[%c0_3, %c0_4] : memref<16x64xf32, #tpu.memory_space<vmem>>, vector<16x64xf32>
    %c0_5 = arith.constant 0 : index
    %c0_6 = arith.constant 0 : index
    %3 = vector.load %arg3[%c0_5, %c0_6] : memref<16x64xf32, #tpu.memory_space<vmem>>, vector<16x64xf32>
    %c0_7 = arith.constant 0 : index
    %c0_8 = arith.constant 0 : index
    %4 = vector.load %arg4[%c0_7, %c0_8] : memref<16x64xf32, #tpu.memory_space<vmem>>, vector<16x64xf32>
    %c0_9 = arith.constant 0 : index
    %c0_10 = arith.constant 0 : index
    %c0_11 = arith.constant 0 : index
    %5 = vector.load %arg5[%c0_9, %c0_10, %c0_11] : memref<3x16x16xf32, #tpu.memory_space<vmem>>, vector<1x16x16xf32>
    %6 = vector.shape_cast %5 : vector<1x16x16xf32> to vector<16x16xf32>
    %c1 = arith.constant 1 : index
    %c0_12 = arith.constant 0 : index
    %c0_13 = arith.constant 0 : index
    %7 = vector.load %arg5[%c1, %c0_12, %c0_13] : memref<3x16x16xf32, #tpu.memory_space<vmem>>, vector<1x16x16xf32>
    %8 = vector.shape_cast %7 : vector<1x16x16xf32> to vector<16x16xf32>
    %c2 = arith.constant 2 : index
    %c0_14 = arith.constant 0 : index
    %c0_15 = arith.constant 0 : index
    %9 = vector.load %arg5[%c2, %c0_14, %c0_15] : memref<3x16x16xf32, #tpu.memory_space<vmem>>, vector<1x16x16xf32>
    %10 = vector.shape_cast %9 : vector<1x16x16xf32> to vector<16x16xf32>
    %c0_16 = arith.constant 0 : index
    %c0_17 = arith.constant 0 : index
    %c0_18 = arith.constant 0 : index
    %11 = vector.load %arg6[%c0_16, %c0_17, %c0_18] : memref<3x16x64xf32, #tpu.memory_space<vmem>>, vector<1x16x64xf32>
    %12 = vector.shape_cast %11 : vector<1x16x64xf32> to vector<16x64xf32>
    %c1_19 = arith.constant 1 : index
    %c0_20 = arith.constant 0 : index
    %c0_21 = arith.constant 0 : index
    %13 = vector.load %arg6[%c1_19, %c0_20, %c0_21] : memref<3x16x64xf32, #tpu.memory_space<vmem>>, vector<1x16x64xf32>
    %14 = vector.shape_cast %13 : vector<1x16x64xf32> to vector<16x64xf32>
    %c2_22 = arith.constant 2 : index
    %c0_23 = arith.constant 0 : index
    %c0_24 = arith.constant 0 : index
    %15 = vector.load %arg6[%c2_22, %c0_23, %c0_24] : memref<3x16x64xf32, #tpu.memory_space<vmem>>, vector<1x16x64xf32>
    %16 = vector.shape_cast %15 : vector<1x16x64xf32> to vector<16x64xf32>
    %17 = arith.addf %3, %4 : vector<16x64xf32>
    %18 = arith.addf %17, %16 : vector<16x64xf32>
    %cst = arith.constant dense<0.000000e+00> : vector<16x64xf32>
    %19 = tpu.matmul %6, %0, %cst {dimension_numbers = #tpu.dot_dimension_numbers<[1], [0], [0], [1], [0, 0, 1, 1], [], []>} : vector<16x16xf32>, vector<16x64xf32>, vector<16x64xf32> -> vector<16x64xf32>
    %20 = arith.addf %19, %12 : vector<16x64xf32>
    %21 = arith.addf %20, %1 : vector<16x64xf32>
    %cst_25 = arith.constant 0.000000e+00 : f32
    %22 = vector.broadcast %cst_25 : f32 to vector<16x64xf32>
    %23 = arith.maximumf %21, %22 : vector<16x64xf32>
    %cst_26 = arith.constant dense<0.000000e+00> : vector<16x64xf32>
    %24 = tpu.matmul %8, %23, %cst_26 {dimension_numbers = #tpu.dot_dimension_numbers<[1], [0], [0], [1], [0, 0, 1, 1], [], []>} : vector<16x16xf32>, vector<16x64xf32>, vector<16x64xf32> -> vector<16x64xf32>
    %25 = arith.addf %24, %14 : vector<16x64xf32>
    %26 = arith.addf %2, %25 : vector<16x64xf32>
    %cst_27 = arith.constant 0.000000e+00 : f32
    %27 = vector.broadcast %cst_27 : f32 to vector<16x64xf32>
    %28 = arith.maximumf %26, %27 : vector<16x64xf32>
    %29 = arith.addf %21, %28 : vector<16x64xf32>
    %cst_28 = arith.constant dense<0.000000e+00> : vector<16x64xf32>
    %30 = tpu.matmul %10, %29, %cst_28 {dimension_numbers = #tpu.dot_dimension_numbers<[1], [0], [0], [1], [0, 0, 1, 1], [], []>} : vector<16x16xf32>, vector<16x64xf32>, vector<16x64xf32> -> vector<16x64xf32>
    %31 = arith.addf %30, %18 : vector<16x64xf32>
    %cst_29 = arith.constant 0.000000e+00 : f32
    %32 = vector.broadcast %cst_29 : f32 to vector<16x64xf32>
    %33 = arith.maximumf %31, %32 : vector<16x64xf32>
    %c0_30 = arith.constant 0 : index
    %c0_31 = arith.constant 0 : index
    %34 = vector.load %arg7[%c0_30, %c0_31] : memref<16x64xf32, #tpu.memory_space<vmem>>, vector<16x64xf32>
    tpu.vector_store %arg7[%c0_30, %c0_31], %33 {strides = array<i32>} : memref<16x64xf32, #tpu.memory_space<vmem>>, vector<16x64xf32>,
    return
  }
}

</mosaic_0001>

<llo_original>
// kernel: tpu_custom_call.1
$region0: #{tpu_custom_call.1}
  #allocation0 [shape = 'u32[]', space=smem, size = 0x4, offset = 0x4, fixed_abs, tag = 'smem constant byte address 0x4 - core index']
  #allocation1 [shape = 'u32[144,128]{1,0:T(1,128)}', space=vmem, size = 0x12000, scoped, tag = 'internal scratch']
  %s0 = inlined_call_operand.hbm [shape: f32[16,64], index: 0, kind: input, shape index: {}]
  %s1 = inlined_call_operand.hbm [shape: f32[16,64], index: 1, kind: input, shape index: {}]
  %s2 = inlined_call_operand.hbm [shape: f32[16,64], index: 2, kind: input, shape index: {}]
  %s3 = inlined_call_operand.hbm [shape: f32[16,64], index: 3, kind: input, shape index: {}]
  %s4 = inlined_call_operand.hbm [shape: f32[16,64], index: 4, kind: input, shape index: {}]
  %s5 = inlined_call_operand.hbm [shape: f32[3,16,16], index: 5, kind: input, shape index: {}]
  %s6 = inlined_call_operand.hbm [shape: f32[3,16,64], index: 6, kind: input, shape index: {}]
  %s7 = inlined_call_operand.hbm [shape: f32[16,64], index: 7, kind: output, shape index: {}]
  %s8 = sld [smem:[#allocation0]]
  $region66: #{tpu_custom_call.1} parent=0
    _
  %s10 = ssub.s32 1, %s8
  %s11 = scalar_select 0, %s10, %s8
  $region1: #{tpu_custom_call.1} parent=0
    #allocation2 [shape = 'u8[8192]{0}', space=vmem, size = 0x2000, scoped, tag = 'input window, operand 0, single buffered']
    #allocation3 [shape = 's32[1]{0}', space=sflag, size = 0x4, scoped, tag = 'scoped memory for tpu_custom_call.1']
    #allocation4 [shape = 's32[1]{0}', space=sflag, size = 0x4, scoped, tag = 'scoped memory for tpu_custom_call.1']
    #allocation5 [shape = 'u8[8192]{0}', space=vmem, size = 0x2000, scoped, tag = 'input window, operand 1, single buffered']
    #allocation6 [shape = 's32[1]{0}', space=sflag, size = 0x4, scoped, tag = 'scoped memory for tpu_custom_call.1']
    #allocation7 [shape = 'u8[8192]{0}', space=vmem, size = 0x2000, scoped, tag = 'input window, operand 2, single buffered']
    #allocation8 [shape = 'u8[8192]{0}', space=vmem, size = 0x2000, scoped, tag = 'input window, operand 3, single buffered']
    #allocation9 [shape = 's32[1]{0}', space=sflag, size = 0x4, scoped, tag = 'scoped memory for tpu_custom_call.1']
    #allocation10 [shape = 'u8[8192]{0}', space=vmem, size = 0x2000, scoped, tag = 'input window, operand 4, single buffered']
    #allocation11 [shape = 'u8[24576]{0}', space=vmem, size = 0x6000, scoped, tag = 'input window, operand 5, single buffered']
    #allocation12 [shape = 's32[1]{0}', space=sflag, size = 0x4, scoped, tag = 'scoped memory for tpu_custom_call.1']
    #allocation13 [shape = 'u8[24576]{0}', space=vmem, size = 0x6000, scoped, tag = 'input window, operand 6, single buffered']
    #allocation14 [shape = 'u8[8192]{0}', space=vmem, size = 0x2000, scoped, tag = 'output window, operand 0, single buffered']
    %12 = vsyncpa [#allocation3], 0
    %13 = vsyncpa [#allocation6], 0
    %14 = vsyncpa [#allocation9], 0
    %15 = vsyncpa [#allocation12], 0
    %16 = vsyncpa [#allocation4], 0
    // Predicated region
    $region2: #{tpu_custom_call.1} parent=1 // pred_check
      _
    $region3: #{tpu_custom_call.1} parent=1 // pred_check_branch
      %18 = sbr.rel (0) target = $region5
    $region4: #{tpu_custom_call.1} parent=1 // pred_region
      %s20 = ssub.s32 256, 256
      %21 = vsyncadd [#allocation3], %s20
      %s22 = sshll.u32 [#allocation2], 4
      %s23 = int_to_ptr.vmem [resolvable:$true] %s22
      %28 = dma.hbm_to_vmem [thread:$0]  %s0, 256, %s23, [#allocation3], 128, 128, 8
    $region5: #{tpu_custom_call.1} parent=1 // pred_fallthru
      _
    // Predicated region
    $region6: #{tpu_custom_call.1} parent=1 // pred_check
      _
    $region7: #{tpu_custom_call.1} parent=1 // pred_check_branch
      %30 = sbr.rel (0) target = $region9
    $region8: #{tpu_custom_call.1} parent=1 // pred_region
      %s32 = ssub.s32 256, 256
      %33 = vsyncadd [#allocation6], %s32
      %s34 = sshll.u32 [#allocation5], 4
      %s35 = int_to_ptr.vmem [resolvable:$true] %s34
      %40 = dma.hbm_to_vmem [thread:$0]  %s1, 256, %s35, [#allocation6], 128, 128, 8
    $region9: #{tpu_custom_call.1} parent=1 // pred_fallthru
      _
    // Predicated region
    $region10: #{tpu_custom_call.1} parent=1 // pred_check
      _
    $region11: #{tpu_custom_call.1} parent=1 // pred_check_branch
      %42 = sbr.rel (0) target = $region13
    $region12: #{tpu_custom_call.1} parent=1 // pred_region
      %s44 = ssub.s32 256, 256
      %45 = vsyncadd [#allocation6], %s44
      %s46 = sshll.u32 [#allocation7], 4
      %s47 = int_to_ptr.vmem [resolvable:$true] %s46
      %52 = dma.hbm_to_vmem [thread:$0]  %s2, 256, %s47, [#allocation6], 128, 128, 8
    $region13: #{tpu_custom_call.1} parent=1 // pred_fallthru
      _
    // Predicated region
    $region14: #{tpu_custom_call.1} parent=1 // pred_check
      _
    $region15: #{tpu_custom_call.1} parent=1 // pred_check_branch
      %54 = sbr.rel (0) target = $region17
    $region16: #{tpu_custom_call.1} parent=1 // pred_region
      %s56 = ssub.s32 256, 256
      %57 = vsyncadd [#allocation9], %s56
      %s58 = sshll.u32 [#allocation8], 4
      %s59 = int_to_ptr.vmem [resolvable:$true] %s58
      %64 = dma.hbm_to_vmem [thread:$0]  %s3, 256, %s59, [#allocation9], 128, 128, 8
    $region17: #{tpu_custom_call.1} parent=1 // pred_fallthru
      _
    // Predicated region
    $region18: #{tpu_custom_call.1} parent=1 // pred_check
      _
    $region19: #{tpu_custom_call.1} parent=1 // pred_check_branch
      %66 = sbr.rel (0) target = $region21
    $region20: #{tpu_custom_call.1} parent=1 // pred_region
      %s68 = ssub.s32 256, 256
      %69 = vsyncadd [#allocation9], %s68
      %s70 = sshll.u32 [#allocation10], 4
      %s71 = int_to_ptr.vmem [resolvable:$true] %s70
      %76 = dma.hbm_to_vmem [thread:$0]  %s4, 256, %s71, [#allocation9], 128, 128, 8
    $region21: #{tpu_custom_call.1} parent=1 // pred_fallthru
      _
    // Predicated region
    $region22: #{tpu_custom_call.1} parent=1 // pred_check
      _
    $region23: #{tpu_custom_call.1} parent=1 // pred_check_branch
      %78 = sbr.rel (0) target = $region25
    $region24: #{tpu_custom_call.1} parent=1 // pred_region
      %s80 = ssub.s32 768, 768
      %81 = vsyncadd [#allocation12], %s80
      %s82 = sshll.u32 [#allocation11], 4
      %s83 = int_to_ptr.vmem [resolvable:$true] %s82
      %88 = dma.hbm_to_vmem [thread:$0]  %s5, 768, %s83, [#allocation12], 128, 128, 8
    $region25: #{tpu_custom_call.1} parent=1 // pred_fallthru
      _
    // Predicated region
    $region26: #{tpu_custom_call.1} parent=1 // pred_check
      _
    $region27: #{tpu_custom_call.1} parent=1 // pred_check_branch
      %90 = sbr.rel (0) target = $region29
    $region28: #{tpu_custom_call.1} parent=1 // pred_region
      %s92 = ssub.s32 768, 768
      %93 = vsyncadd [#allocation12], %s92
      %s94 = sshll.u32 [#allocation13], 4
      %s95 = int_to_ptr.vmem [resolvable:$true] %s94
      %100 = dma.hbm_to_vmem [thread:$0]  %s6, 768, %s95, [#allocation12], 128, 128, 8
    $region29: #{tpu_custom_call.1} parent=1 // pred_fallthru
      _
    // Predicated region
    $region30: #{tpu_custom_call.1} parent=1 // pred_check
      _
    $region31: #{tpu_custom_call.1} parent=1 // pred_check_branch
      %102 = sbr.rel (0) target = $region33
    $region32: #{tpu_custom_call.1} parent=1 // pred_region
      %103 = dma.done [#allocation3], 256
    $region33: #{tpu_custom_call.1} parent=1 // pred_fallthru
      _
    // Predicated region
    $region34: #{tpu_custom_call.1} parent=1 // pred_check
      _
    $region35: #{tpu_custom_call.1} parent=1 // pred_check_branch
      %105 = sbr.rel (0) target = $region37
    $region36: #{tpu_custom_call.1} parent=1 // pred_region
      %106 = dma.done [#allocation6], 256
    $region37: #{tpu_custom_call.1} parent=1 // pred_fallthru
      _
    // Predicated region
    $region38: #{tpu_custom_call.1} parent=1 // pred_check
      _
    $region39: #{tpu_custom_call.1} parent=1 // pred_check_branch
      %108 = sbr.rel (0) target = $region41
    $region40: #{tpu_custom_call.1} parent=1 // pred_region
      %109 = dma.done [#allocation6], 256
    $region41: #{tpu_custom_call.1} parent=1 // pred_fallthru
      _
    // Predicated region
    $region42: #{tpu_custom_call.1} parent=1 // pred_check
      _
    $region43: #{tpu_custom_call.1} parent=1 // pred_check_branch
      %111 = sbr.rel (0) target = $region45
    $region44: #{tpu_custom_call.1} parent=1 // pred_region
      %112 = dma.done [#allocation9], 256
    $region45: #{tpu_custom_call.1} parent=1 // pred_fallthru
      _
    // Predicated region
    $region46: #{tpu_custom_call.1} parent=1 // pred_check
      _
    $region47: #{tpu_custom_call.1} parent=1 // pred_check_branch
      %114 = sbr.rel (0) target = $region49
    $region48: #{tpu_custom_call.1} parent=1 // pred_region
      %115 = dma.done [#allocation9], 256
    $region49: #{tpu_custom_call.1} parent=1 // pred_fallthru
      _
    // Predicated region
    $region50: #{tpu_custom_call.1} parent=1 // pred_check
      _
    $region51: #{tpu_custom_call.1} parent=1 // pred_check_branch
      %117 = sbr.rel (0) target = $region53
    $region52: #{tpu_custom_call.1} parent=1 // pred_region
      %118 = dma.done [#allocation12], 768
    $region53: #{tpu_custom_call.1} parent=1 // pred_fallthru
      _
    // Predicated region
    $region54: #{tpu_custom_call.1} parent=1 // pred_check
      _
    $region55: #{tpu_custom_call.1} parent=1 // pred_check_branch
      %120 = sbr.rel (0) target = $region57
    $region56: #{tpu_custom_call.1} parent=1 // pred_region
      %121 = dma.done [#allocation12], 768
    $region57: #{tpu_custom_call.1} parent=1 // pred_fallthru
      _
    %v122 = vld [vmem:[#allocation2] sm:$0xff]
    %v123 = vld [vmem:[#allocation2 + $0x8] sm:$0xff]
    %v124 = vld [vmem:[#allocation5] sm:$0xff]
    %v125 = vld [vmem:[#allocation5 + $0x8] sm:$0xff]
    %v126 = vld [vmem:[#allocation7] sm:$0xff]
    %v127 = vld [vmem:[#allocation7 + $0x8] sm:$0xff]
    %v128 = vld [vmem:[#allocation8] sm:$0xff]
    %v129 = vld [vmem:[#allocation8 + $0x8] sm:$0xff]
    %v130 = vld [vmem:[#allocation10] sm:$0xff]
    %v131 = vld [vmem:[#allocation10 + $0x8] sm:$0xff]
    %v132 = vld [vmem:[#allocation11] sm:$0xff]
    %v133 = vld [vmem:[#allocation11 + $0x8] sm:$0xff]
    %s134 = scalar_lea.vmem [#allocation11], 16
    %v135 = vld [vmem:[%s134] sm:$0xff]
    %v136 = vld [vmem:[%s134 + $0x8] sm:$0xff]
    %s137 = scalar_lea.vmem [#allocation11], 32
    %v138 = vld [vmem:[%s137] sm:$0xff]
    %v139 = vld [vmem:[%s137 + $0x8] sm:$0xff]
    %v140 = vld [vmem:[#allocation13] sm:$0xff]
    %v141 = vld [vmem:[#allocation13 + $0x8] sm:$0xff]
    %s142 = scalar_lea.vmem [#allocation13], 16
    %v143 = vld [vmem:[%s142] sm:$0xff]
    %v144 = vld [vmem:[%s142 + $0x8] sm:$0xff]
    %s145 = scalar_lea.vmem [#allocation13], 32
    %v146 = vld [vmem:[%s145] sm:$0xff]
    %v147 = vld [vmem:[%s145 + $0x8] sm:$0xff]
    %v148 = vadd.f32 %v128, %v130
    %v149 = vadd.f32 %v129, %v131
    %v150 = vadd.f32 %v148, %v146
    %v151 = vadd.f32 %v149, %v147
    %vm152 = vcmask 130048
    %v154 = vsel %vm152, %v132, 0
    %v157 = vsel %vm152, %v133, 0
    %159 = vmatprep.subr.mxu0 0.0
    %160 = vmatpush1.msra.mxu0 0.0
    %161 = vmatprep.subr.mxu0 0.0
    %162 = vmatpush1.msra.mxu0 0.0
    %163 = vmatprep.subr.mxu0 0.0
    %164 = vmatpush1.msra.mxu0 0.0
    %165 = vmatprep.subr.mxu0 0.0
    %166 = vmatpush1.msra.mxu0 0.0
    %167 = vmatprep.subr.mxu0 0.0
    %168 = vmatpush1.msra.mxu0 0.0
    %169 = vmatprep.subr.mxu0 0.0
    %170 = vmatpush1.msra.mxu0 0.0
    %171 = vmatprep.subr.mxu0 0.0
    %172 = vmatpush1.msra.mxu0 0.0
    %173 = vmatprep.subr.mxu0 0.0
    %174 = vmatpush1.msra.mxu0 0.0
    %175 = vmatprep.subr.mxu0 0.0
    %176 = vmatpush1.msra.mxu0 0.0
    %177 = vmatprep.subr.mxu0 0.0
    %178 = vmatpush1.msra.mxu0 0.0
    %179 = vmatprep.subr.mxu0 0.0
    %180 = vmatpush1.msra.mxu0 0.0
    %181 = vmatprep.subr.mxu0 0.0
    %182 = vmatpush1.msra.mxu0 0.0
    %183 = vmatprep.subr.mxu0 0.0
    %184 = vmatpush1.msra.mxu0 0.0
    %185 = vmatprep.subr.mxu0 0.0
    %186 = vmatpush1.msra.mxu0 0.0
    %187 = vmatprep.subr.mxu0 0.0
    %188 = vmatpush1.msra.mxu0 %v123
    %189 = vmatprep.subr.mxu0 0.0
    %190 = vmatpush1.msra.mxu0 %v122
    %191 = vmatprep.subr.mxu0 0.0
    %192 = vmatpush2.msra.mxu0 0.0
    %193 = vmatprep.subr.mxu0 0.0
    %194 = vmatpush2.msra.mxu0 0.0
    %195 = vmatprep.subr.mxu0 0.0
    %196 = vmatpush2.msra.mxu0 0.0
    %197 = vmatprep.subr.mxu0 0.0
    %198 = vmatpush2.msra.mxu0 0.0
    %199 = vmatprep.subr.mxu0 0.0
    %200 = vmatpush2.msra.mxu0 0.0
    %201 = vmatprep.subr.mxu0 0.0
    %202 = vmatpush2.msra.mxu0 0.0
    %203 = vmatprep.subr.mxu0 0.0
    %204 = vmatpush2.msra.mxu0 0.0
    %205 = vmatprep.subr.mxu0 0.0
    %206 = vmatpush2.msra.mxu0 0.0
    %207 = vmatprep.subr.mxu0 0.0
    %208 = vmatpush2.msra.mxu0 0.0
    %209 = vmatprep.subr.mxu0 0.0
    %210 = vmatpush2.msra.mxu0 0.0
    %211 = vmatprep.subr.mxu0 0.0
    %212 = vmatpush2.msra.mxu0 0.0
    %213 = vmatprep.subr.mxu0 0.0
    %214 = vmatpush2.msra.mxu0 0.0
    %215 = vmatprep.subr.mxu0 0.0
    %216 = vmatpush2.msra.mxu0 0.0
    %217 = vmatprep.subr.mxu0 0.0
    %218 = vmatpush2.msra.mxu0 0.0
    %219 = vmatprep.subr.mxu0 0.0
    %220 = vmatpush2.msra.mxu0 0.0
    %221 = vmatprep.subr.mxu0 0.0
    %222 = vmatpush2.msra.mxu0 0.0
    %223 = vmatprep.mubr.f32.mxu0 0.0
    %224 = vmatmul.mubr.f32.gmra.mxu0 %v154
    %v225 = vpop.f32.mrf.mxu0
    %v226 = vadd.f32 %v140, %v225
    %v227 = vpop.f32.mrf.mxu0
    %228 = vmatprep.mubr.f32.mxu0 0.0
    %229 = vmatmul.mubr.f32.gmra.mxu0 %v157
    %v230 = vpop.f32.mrf.mxu0
    %v231 = vadd.f32 %v141, %v230
    %v232 = vpop.f32.mrf.mxu0
    %233 = vdwg.mxu0
    %v234 = vadd.f32 %v226, %v124
    %v235 = vadd.f32 %v231, %v125
    %v236 = vmax.f32 %v234, 0.0
    %v237 = vmax.f32 %v235, 0.0
    %v239 = vsel %vm152, %v135, 0
    %v242 = vsel %vm152, %v136, 0
    %244 = vmatprep.subr.mxu0 0.0
    %245 = vmatpush1.msra.mxu0 0.0
    %246 = vmatprep.subr.mxu0 0.0
    %247 = vmatpush1.msra.mxu0 0.0
    %248 = vmatprep.subr.mxu0 0.0
    %249 = vmatpush1.msra.mxu0 0.0
    %250 = vmatprep.subr.mxu0 0.0
    %251 = vmatpush1.msra.mxu0 0.0
    %252 = vmatprep.subr.mxu0 0.0
    %253 = vmatpush1.msra.mxu0 0.0
    %254 = vmatprep.subr.mxu0 0.0
    %255 = vmatpush1.msra.mxu0 0.0
    %256 = vmatprep.subr.mxu0 0.0
    %257 = vmatpush1.msra.mxu0 0.0
    %258 = vmatprep.subr.mxu0 0.0
    %259 = vmatpush1.msra.mxu0 0.0
    %260 = vmatprep.subr.mxu0 0.0
    %261 = vmatpush1.msra.mxu0 0.0
    %262 = vmatprep.subr.mxu0 0.0
    %263 = vmatpush1.msra.mxu0 0.0
    %264 = vmatprep.subr.mxu0 0.0
    %265 = vmatpush1.msra.mxu0 0.0
    %266 = vmatprep.subr.mxu0 0.0
    %267 = vmatpush1.msra.mxu0 0.0
    %268 = vmatprep.subr.mxu0 0.0
    %269 = vmatpush1.msra.mxu0 0.0
    %270 = vmatprep.subr.mxu0 0.0
    %271 = vmatpush1.msra.mxu0 0.0
    %272 = vmatprep.subr.mxu0 0.0
    %273 = vmatpush1.msra.mxu0 %v237
    %274 = vmatprep.subr.mxu0 0.0
    %275 = vmatpush1.msra.mxu0 %v236
    %276 = vmatprep.subr.mxu0 0.0
    %277 = vmatpush2.msra.mxu0 0.0
    %278 = vmatprep.subr.mxu0 0.0
    %279 = vmatpush2.msra.mxu0 0.0
    %280 = vmatprep.subr.mxu0 0.0
    %281 = vmatpush2.msra.mxu0 0.0
    %282 = vmatprep.subr.mxu0 0.0
    %283 = vmatpush2.msra.mxu0 0.0
    %284 = vmatprep.subr.mxu0 0.0
    %285 = vmatpush2.msra.mxu0 0.0
    %286 = vmatprep.subr.mxu0 0.0
    %287 = vmatpush2.msra.mxu0 0.0
    %288 = vmatprep.subr.mxu0 0.0
    %289 = vmatpush2.msra.mxu0 0.0
    %290 = vmatprep.subr.mxu0 0.0
    %291 = vmatpush2.msra.mxu0 0.0
    %292 = vmatprep.subr.mxu0 0.0
    %293 = vmatpush2.msra.mxu0 0.0
    %294 = vmatprep.subr.mxu0 0.0
    %295 = vmatpush2.msra.mxu0 0.0
    %296 = vmatprep.subr.mxu0 0.0
    %297 = vmatpush2.msra.mxu0 0.0
    %298 = vmatprep.subr.mxu0 0.0
    %299 = vmatpush2.msra.mxu0 0.0
    %300 = vmatprep.subr.mxu0 0.0
    %301 = vmatpush2.msra.mxu0 0.0
    %302 = vmatprep.subr.mxu0 0.0
    %303 = vmatpush2.msra.mxu0 0.0
    %304 = vmatprep.subr.mxu0 0.0
    %305 = vmatpush2.msra.mxu0 0.0
    %306 = vmatprep.subr.mxu0 0.0
    %307 = vmatpush2.msra.mxu0 0.0
    %308 = vmatprep.mubr.f32.mxu0 0.0
    %309 = vmatmul.mubr.f32.gmra.mxu0 %v239
    %v310 = vpop.f32.mrf.mxu0
    %v311 = vadd.f32 %v143, %v310
    %v312 = vpop.f32.mrf.mxu0
    %313 = vmatprep.mubr.f32.mxu0 0.0
    %314 = vmatmul.mubr.f32.gmra.mxu0 %v242
    %v315 = vpop.f32.mrf.mxu0
    %v316 = vadd.f32 %v144, %v315
    %v317 = vpop.f32.mrf.mxu0
    %318 = vdwg.mxu0
    %v319 = vadd.f32 %v126, %v311
    %v320 = vadd.f32 %v127, %v316
    %v321 = vmax.f32 %v319, 0.0
    %v322 = vmax.f32 %v320, 0.0
    %v323 = vadd.f32 %v234, %v321
    %v324 = vadd.f32 %v235, %v322
    %v326 = vsel %vm152, %v138, 0
    %v329 = vsel %vm152, %v139, 0
    %331 = vmatprep.subr.mxu0 0.0
    %332 = vmatpush1.msra.mxu0 0.0
    %333 = vmatprep.subr.mxu0 0.0
    %334 = vmatpush1.msra.mxu0 0.0
    %335 = vmatprep.subr.mxu0 0.0
    %336 = vmatpush1.msra.mxu0 0.0
    %337 = vmatprep.subr.mxu0 0.0
    %338 = vmatpush1.msra.mxu0 0.0
    %339 = vmatprep.subr.mxu0 0.0
    %340 = vmatpush1.msra.mxu0 0.0
    %341 = vmatprep.subr.mxu0 0.0
    %342 = vmatpush1.msra.mxu0 0.0
    %343 = vmatprep.subr.mxu0 0.0
    %344 = vmatpush1.msra.mxu0 0.0
    %345 = vmatprep.subr.mxu0 0.0
    %346 = vmatpush1.msra.mxu0 0.0
    %347 = vmatprep.subr.mxu0 0.0
    %348 = vmatpush1.msra.mxu0 0.0
    %349 = vmatprep.subr.mxu0 0.0
    %350 = vmatpush1.msra.mxu0 0.0
    %351 = vmatprep.subr.mxu0 0.0
    %352 = vmatpush1.msra.mxu0 0.0
    %353 = vmatprep.subr.mxu0 0.0
    %354 = vmatpush1.msra.mxu0 0.0
    %355 = vmatprep.subr.mxu0 0.0
    %356 = vmatpush1.msra.mxu0 0.0
    %357 = vmatprep.subr.mxu0 0.0
    %358 = vmatpush1.msra.mxu0 0.0
    %359 = vmatprep.subr.mxu0 0.0
    %360 = vmatpush1.msra.mxu0 %v324
    %361 = vmatprep.subr.mxu0 0.0
    %362 = vmatpush1.msra.mxu0 %v323
    %363 = vmatprep.subr.mxu0 0.0
    %364 = vmatpush2.msra.mxu0 0.0
    %365 = vmatprep.subr.mxu0 0.0
    %366 = vmatpush2.msra.mxu0 0.0
    %367 = vmatprep.subr.mxu0 0.0
    %368 = vmatpush2.msra.mxu0 0.0
    %369 = vmatprep.subr.mxu0 0.0
    %370 = vmatpush2.msra.mxu0 0.0
    %371 = vmatprep.subr.mxu0 0.0
    %372 = vmatpush2.msra.mxu0 0.0
    %373 = vmatprep.subr.mxu0 0.0
    %374 = vmatpush2.msra.mxu0 0.0
    %375 = vmatprep.subr.mxu0 0.0
    %376 = vmatpush2.msra.mxu0 0.0
    %377 = vmatprep.subr.mxu0 0.0
    %378 = vmatpush2.msra.mxu0 0.0
    %379 = vmatprep.subr.mxu0 0.0
    %380 = vmatpush2.msra.mxu0 0.0
    %381 = vmatprep.subr.mxu0 0.0
    %382 = vmatpush2.msra.mxu0 0.0
    %383 = vmatprep.subr.mxu0 0.0
    %384 = vmatpush2.msra.mxu0 0.0
    %385 = vmatprep.subr.mxu0 0.0
    %386 = vmatpush2.msra.mxu0 0.0
    %387 = vmatprep.subr.mxu0 0.0
    %388 = vmatpush2.msra.mxu0 0.0
    %389 = vmatprep.subr.mxu0 0.0
    %390 = vmatpush2.msra.mxu0 0.0
    %391 = vmatprep.subr.mxu0 0.0
    %392 = vmatpush2.msra.mxu0 0.0
    %393 = vmatprep.subr.mxu0 0.0
    %394 = vmatpush2.msra.mxu0 0.0
    %395 = vmatprep.mubr.f32.mxu0 0.0
    %396 = vmatmul.mubr.f32.gmra.mxu0 %v326
    %v397 = vpop.f32.mrf.mxu0
    %v398 = vadd.f32 %v150, %v397
    %v399 = vpop.f32.mrf.mxu0
    %400 = vmatprep.mubr.f32.mxu0 0.0
    %401 = vmatmul.mubr.f32.gmra.mxu0 %v329
    %v402 = vpop.f32.mrf.mxu0
    %v403 = vadd.f32 %v151, %v402
    %v404 = vpop.f32.mrf.mxu0
    %405 = vdwg.mxu0
    %v406 = vmax.f32 %v398, 0.0
    %v407 = vmax.f32 %v403, 0.0
    %vm408 = vcmask 523264
    %409 = vst.msk [vmem:[#allocation14] sm:$0xff] %vm408, %v406
    %410 = vst.msk [vmem:[#allocation14 + $0x8] sm:$0xff] %vm408, %v407
    // Predicated region
    $region58: #{tpu_custom_call.1} parent=1 // pred_check
      _
    $region59: #{tpu_custom_call.1} parent=1 // pred_check_branch
      %412 = sbr.rel (0) target = $region61
    $region60: #{tpu_custom_call.1} parent=1 // pred_region
      %s414 = ssub.s32 256, 256
      %415 = vsyncadd [#allocation4], %s414
      %s416 = sshll.u32 [#allocation14], 4
      %s417 = int_to_ptr.vmem [resolvable:$true] %s416
      %422 = dma.vmem_to_hbm [thread:$0]  %s417, 256, %s7, [#allocation4], 128, 128, 8
    $region61: #{tpu_custom_call.1} parent=1 // pred_fallthru
      _
    // Predicated region
    $region62: #{tpu_custom_call.1} parent=1 // pred_check
      _
    $region63: #{tpu_custom_call.1} parent=1 // pred_check_branch
      %424 = sbr.rel (0) target = $region65
    $region64: #{tpu_custom_call.1} parent=1 // pred_region
      %425 = dma.done [#allocation4], 256
    $region65: #{tpu_custom_call.1} parent=1 // pred_fallthru
      _
    %426 = vsyncpa [#allocation3], 1
    %427 = vsyncpa [#allocation6], 1
    %428 = vsyncpa [#allocation9], 1
    %429 = vsyncpa [#allocation12], 1
    %430 = vsyncpa [#allocation4], 1

</llo_original>
